<compile_context>
chip_gen: v5e
topology: v5e:2x2
jax: 0.10.0
libtpu: 0.0.40
codegen_flags: <defaults>
</compile_context>

<pallas_src>
import functools
import math

import jax
import jax.numpy as jnp
from jax.experimental import pallas as pl
from jax.experimental.pallas import tpu as pltpu


def _gather_kernel(rows_per_block, idx_is_ensembled,
                   idx_ref, emb_hbm, out_ref, row_buf, sem):
    """Gathers `rows_per_block` embedding rows for one (ensemble, block) step.

    idx_ref : SMEM (idx_e, n_pad) int32  -- scalar-prefetched indices
    emb_hbm : HBM  (E, V, D)             -- embedding table, no auto-DMA
    out_ref : VMEM (rows_per_block, D)   -- output block
    row_buf : VMEM (rows_per_block, D)   -- DMA landing buffer
    sem     : single DMA semaphore (shared; all copies are equal-sized)
    """
    e = pl.program_id(0)
    nb = pl.program_id(1)
    e_idx = e if idx_is_ensembled else 0      # static Python branch
    base = nb * rows_per_block

    # Issue all row DMAs first so they are in flight concurrently, then wait.
    copies = []
    for i in range(rows_per_block):           # static unroll (small block)
        row = idx_ref[e_idx, base + i]        # scalar read from SMEM
        cp = pltpu.make_async_copy(
            emb_hbm.at[e, pl.ds(row, 1), :],  # (1, D) row in HBM
            row_buf.at[pl.ds(i, 1), :],       # (1, D) slot in VMEM
            sem)
        cp.start()
        copies.append(cp)
    for cp in copies:
        cp.wait()

    out_ref[...] = row_buf[...]


def ensembled_embedding(indices: jax.Array, embedding: jax.Array,
                        *, rows_per_block: int = 8) -> jax.Array:
    """JAX wrapper reproducing Embedding.forward semantics."""
    ensemble_shape = embedding.shape[:-2]
    ne = len(ensemble_shape)
    vocab, dim = embedding.shape[-2:]

    # to_ensembled: detect whether indices already carry the ensemble prefix.
    idx_is_ensembled = indices.shape[:ne] == ensemble_shape
    batch_shape = indices.shape[ne:] if idx_is_ensembled else indices.shape

    e_flat = math.prod(ensemble_shape) if ensemble_shape else 1
    n_flat = math.prod(batch_shape) if batch_shape else 1

    # Do NOT broadcast non-ensembled indices to (E, N); keep a single copy.
    idx_e = e_flat if idx_is_ensembled else 1
    idx_flat = indices.reshape(idx_e, n_flat).astype(jnp.int32)
    # Clamp so a stray out-of-range index cannot trigger an OOB DMA.
    # (PyTorch would raise; here we clamp for safety.)
    idx_flat = jnp.clip(idx_flat, 0, vocab - 1)

    tn = max(1, min(rows_per_block, n_flat))
    n_pad = -(-n_flat // tn) * tn
    if n_pad != n_flat:
        # Padded rows gather row 0 and are sliced away afterwards.
        idx_flat = jnp.pad(idx_flat, ((0, 0), (0, n_pad - n_flat)))
    n_blocks = n_pad // tn

    emb_flat = embedding.reshape(e_flat, vocab, dim)

    kernel = functools.partial(_gather_kernel, tn, idx_is_ensembled)

    out = pl.pallas_call(
        kernel,
        out_shape=jax.ShapeDtypeStruct((e_flat, n_pad, dim), embedding.dtype),
        grid_spec=pltpu.PrefetchScalarGridSpec(
            num_scalar_prefetch=1,                 # idx_flat -> SMEM
            grid=(e_flat, n_blocks),
            in_specs=[
                pl.BlockSpec(memory_space=pl.ANY),  # table stays in HBM
            ],
            out_specs=pl.BlockSpec((None, tn, dim),
                                   lambda e, nb, idx: (e, nb, 0)),
            scratch_shapes=[
                pltpu.VMEM((tn, dim), embedding.dtype),
                pltpu.SemaphoreType.DMA,
            ],
        ),
        compiler_params=pltpu.CompilerParams(
            dimension_semantics=("parallel", "parallel")),
    )(idx_flat, emb_flat)

    out = out[:, :n_flat, :]
    return out.reshape(ensemble_shape + batch_shape + (dim,))


if __name__ == "__main__":
    # Config mirroring the PyTorch module's __init__.
    ensemble_shape = (2,)
    vocabulary_size = 64
    embedding_dim = 128
    batch_shape = (4, 8)   # flattened N = 32

    key = jax.random.PRNGKey(0)
    k_emb, k_idx, k_idx_e = jax.random.split(key, 3)

    # Deterministic "normal_()" init of the embedding parameter.
    embedding = jax.random.normal(
        k_emb, ensemble_shape + (vocabulary_size, embedding_dim),
        dtype=jnp.float32)

    # Case 1: non-ensembled indices (exercises the to_ensembled broadcast path
    # without ever materializing E copies of the indices).
    indices = jax.random.randint(
        k_idx, batch_shape, 0, vocabulary_size, dtype=jnp.int32)
    out = jax.block_until_ready(ensembled_embedding(indices, embedding))

    idx_b = jnp.broadcast_to(indices, ensemble_shape + batch_shape)
    ref = jnp.take_along_axis(
        embedding, idx_b.reshape(ensemble_shape + (-1, 1)), axis=-2,
    ).reshape(ensemble_shape + batch_shape + (embedding_dim,))
    assert out.shape == ensemble_shape + batch_shape + (embedding_dim,)
    assert jnp.array_equal(out, ref), "mismatch vs reference (non-ensembled)"

    # Case 2: ensembled indices (shape ensemble_shape + batch_shape).
    indices_e = jax.random.randint(
        k_idx_e, ensemble_shape + batch_shape, 0, vocabulary_size,
        dtype=jnp.int32)
    out_e = jax.block_until_ready(ensembled_embedding(indices_e, embedding))
    ref_e = jnp.take_along_axis(
        embedding, indices_e.reshape(ensemble_shape + (-1, 1)), axis=-2,
    ).reshape(ensemble_shape + batch_shape + (embedding_dim,))
    assert jnp.array_equal(out_e, ref_e), "mismatch vs reference (ensembled)"

    print("KERNEL_OK")
</pallas_src>

<mosaic_0001>
module attributes {stable_mosaic.version = 11 : i64} {
  func.func @_gather_kernel(%arg0: i32, %arg1: i32, %arg2: memref<1x32xi32, #tpu.memory_space<smem>>, %arg3: memref<2x64x128xf32, #tpu.memory_space<any>>, %arg4: memref<1x8x128xf32, #tpu.memory_space<vmem>>, %arg5: memref<8x128xf32, #tpu.memory_space<vmem>>, %arg6: memref<!tpu.dma_semaphore, #tpu.memory_space<semaphore_mem>>) attributes {dimension_semantics = [#tpu.dimension_semantics<parallel>, #tpu.dimension_semantics<parallel>], iteration_bounds = array<i64: 2, 4>, scalar_prefetch = 1 : i64, scratch_operands = 2 : i64, tpu.core_type = #tpu.core_type<tc>, window_params = [{}, {transform_indices = @transform_1, window_bounds = array<i64: 1, 8, 128>}]} {
    %c8_i32 = arith.constant 8 : i32
    %0 = arith.muli %arg1, %c8_i32 : i32
    %c0_i32 = arith.constant 0 : i32
    %1 = arith.addi %0, %c0_i32 : i32
    %c0 = arith.constant 0 : index
    %2 = arith.index_cast %1 : i32 to index
    %3 = memref.load %arg2[%c0, %2] : memref<1x32xi32, #tpu.memory_space<smem>>
    %c0_i32_0 = arith.constant 0 : i32
    %4 = tpu.memref_slice %arg3[%arg0, %3, %c0_i32_0] : memref<2x64x128xf32, #tpu.memory_space<any>> -> memref<1x1x128xf32, #tpu.memory_space<any>>
    %5 = tpu.memref_squeeze %4 : memref<1x1x128xf32, #tpu.memory_space<any>> -> memref<1x128xf32, #tpu.memory_space<any>>
    %c0_i32_1 = arith.constant 0 : i32
    %c0_i32_2 = arith.constant 0 : i32
    %6 = tpu.memref_slice %arg5[%c0_i32_1, %c0_i32_2] : memref<8x128xf32, #tpu.memory_space<vmem>> -> memref<1x128xf32, #tpu.memory_space<vmem>>
    tpu.enqueue_dma source(%5 : memref<1x128xf32, #tpu.memory_space<any>>) target(%6 : memref<1x128xf32, #tpu.memory_space<vmem>>) target_semaphore(%arg6 : memref<!tpu.dma_semaphore, #tpu.memory_space<semaphore_mem>>)
    %c1_i32 = arith.constant 1 : i32
    %7 = arith.addi %0, %c1_i32 : i32
    %c0_3 = arith.constant 0 : index
    %8 = arith.index_cast %7 : i32 to index
    %9 = memref.load %arg2[%c0_3, %8] : memref<1x32xi32, #tpu.memory_space<smem>>
    %c0_i32_4 = arith.constant 0 : i32
    %10 = tpu.memref_slice %arg3[%arg0, %9, %c0_i32_4] : memref<2x64x128xf32, #tpu.memory_space<any>> -> memref<1x1x128xf32, #tpu.memory_space<any>>
    %11 = tpu.memref_squeeze %10 : memref<1x1x128xf32, #tpu.memory_space<any>> -> memref<1x128xf32, #tpu.memory_space<any>>
    %c1_i32_5 = arith.constant 1 : i32
    %c0_i32_6 = arith.constant 0 : i32
    %12 = tpu.memref_slice %arg5[%c1_i32_5, %c0_i32_6] : memref<8x128xf32, #tpu.memory_space<vmem>> -> memref<1x128xf32, #tpu.memory_space<vmem>>
    tpu.enqueue_dma source(%11 : memref<1x128xf32, #tpu.memory_space<any>>) target(%12 : memref<1x128xf32, #tpu.memory_space<vmem>>) target_semaphore(%arg6 : memref<!tpu.dma_semaphore, #tpu.memory_space<semaphore_mem>>)
    %c2_i32 = arith.constant 2 : i32
    %13 = arith.addi %0, %c2_i32 : i32
    %c0_7 = arith.constant 0 : index
    %14 = arith.index_cast %13 : i32 to index
    %15 = memref.load %arg2[%c0_7, %14] : memref<1x32xi32, #tpu.memory_space<smem>>
    %c0_i32_8 = arith.constant 0 : i32
    %16 = tpu.memref_slice %arg3[%arg0, %15, %c0_i32_8] : memref<2x64x128xf32, #tpu.memory_space<any>> -> memref<1x1x128xf32, #tpu.memory_space<any>>
    %17 = tpu.memref_squeeze %16 : memref<1x1x128xf32, #tpu.memory_space<any>> -> memref<1x128xf32, #tpu.memory_space<any>>
    %c2_i32_9 = arith.constant 2 : i32
    %c0_i32_10 = arith.constant 0 : i32
    %18 = tpu.memref_slice %arg5[%c2_i32_9, %c0_i32_10] : memref<8x128xf32, #tpu.memory_space<vmem>> -> memref<1x128xf32, #tpu.memory_space<vmem>>
    tpu.enqueue_dma source(%17 : memref<1x128xf32, #tpu.memory_space<any>>) target(%18 : memref<1x128xf32, #tpu.memory_space<vmem>>) target_semaphore(%arg6 : memref<!tpu.dma_semaphore, #tpu.memory_space<semaphore_mem>>)
    %c3_i32 = arith.constant 3 : i32
    %19 = arith.addi %0, %c3_i32 : i32
    %c0_11 = arith.constant 0 : index
    %20 = arith.index_cast %19 : i32 to index
    %21 = memref.load %arg2[%c0_11, %20] : memref<1x32xi32, #tpu.memory_space<smem>>
    %c0_i32_12 = arith.constant 0 : i32
    %22 = tpu.memref_slice %arg3[%arg0, %21, %c0_i32_12] : memref<2x64x128xf32, #tpu.memory_space<any>> -> memref<1x1x128xf32, #tpu.memory_space<any>>
    %23 = tpu.memref_squeeze %22 : memref<1x1x128xf32, #tpu.memory_space<any>> -> memref<1x128xf32, #tpu.memory_space<any>>
    %c3_i32_13 = arith.constant 3 : i32
    %c0_i32_14 = arith.constant 0 : i32
    %24 = tpu.memref_slice %arg5[%c3_i32_13, %c0_i32_14] : memref<8x128xf32, #tpu.memory_space<vmem>> -> memref<1x128xf32, #tpu.memory_space<vmem>>
    tpu.enqueue_dma source(%23 : memref<1x128xf32, #tpu.memory_space<any>>) target(%24 : memref<1x128xf32, #tpu.memory_space<vmem>>) target_semaphore(%arg6 : memref<!tpu.dma_semaphore, #tpu.memory_space<semaphore_mem>>)
    %c4_i32 = arith.constant 4 : i32
    %25 = arith.addi %0, %c4_i32 : i32
    %c0_15 = arith.constant 0 : index
    %26 = arith.index_cast %25 : i32 to index
    %27 = memref.load %arg2[%c0_15, %26] : memref<1x32xi32, #tpu.memory_space<smem>>
    %c0_i32_16 = arith.constant 0 : i32
    %28 = tpu.memref_slice %arg3[%arg0, %27, %c0_i32_16] : memref<2x64x128xf32, #tpu.memory_space<any>> -> memref<1x1x128xf32, #tpu.memory_space<any>>
    %29 = tpu.memref_squeeze %28 : memref<1x1x128xf32, #tpu.memory_space<any>> -> memref<1x128xf32, #tpu.memory_space<any>>
    %c4_i32_17 = arith.constant 4 : i32
    %c0_i32_18 = arith.constant 0 : i32
    %30 = tpu.memref_slice %arg5[%c4_i32_17, %c0_i32_18] : memref<8x128xf32, #tpu.memory_space<vmem>> -> memref<1x128xf32, #tpu.memory_space<vmem>>
    tpu.enqueue_dma source(%29 : memref<1x128xf32, #tpu.memory_space<any>>) target(%30 : memref<1x128xf32, #tpu.memory_space<vmem>>) target_semaphore(%arg6 : memref<!tpu.dma_semaphore, #tpu.memory_space<semaphore_mem>>)
    %c5_i32 = arith.constant 5 : i32
    %31 = arith.addi %0, %c5_i32 : i32
    %c0_19 = arith.constant 0 : index
    %32 = arith.index_cast %31 : i32 to index
    %33 = memref.load %arg2[%c0_19, %32] : memref<1x32xi32, #tpu.memory_space<smem>>
    %c0_i32_20 = arith.constant 0 : i32
    %34 = tpu.memref_slice %arg3[%arg0, %33, %c0_i32_20] : memref<2x64x128xf32, #tpu.memory_space<any>> -> memref<1x1x128xf32, #tpu.memory_space<any>>
    %35 = tpu.memref_squeeze %34 : memref<1x1x128xf32, #tpu.memory_space<any>> -> memref<1x128xf32, #tpu.memory_space<any>>
    %c5_i32_21 = arith.constant 5 : i32
    %c0_i32_22 = arith.constant 0 : i32
    %36 = tpu.memref_slice %arg5[%c5_i32_21, %c0_i32_22] : memref<8x128xf32, #tpu.memory_space<vmem>> -> memref<1x128xf32, #tpu.memory_space<vmem>>
    tpu.enqueue_dma source(%35 : memref<1x128xf32, #tpu.memory_space<any>>) target(%36 : memref<1x128xf32, #tpu.memory_space<vmem>>) target_semaphore(%arg6 : memref<!tpu.dma_semaphore, #tpu.memory_space<semaphore_mem>>)
    %c6_i32 = arith.constant 6 : i32
    %37 = arith.addi %0, %c6_i32 : i32
    %c0_23 = arith.constant 0 : index
    %38 = arith.index_cast %37 : i32 to index
    %39 = memref.load %arg2[%c0_23, %38] : memref<1x32xi32, #tpu.memory_space<smem>>
    %c0_i32_24 = arith.constant 0 : i32
    %40 = tpu.memref_slice %arg3[%arg0, %39, %c0_i32_24] : memref<2x64x128xf32, #tpu.memory_space<any>> -> memref<1x1x128xf32, #tpu.memory_space<any>>
    %41 = tpu.memref_squeeze %40 : memref<1x1x128xf32, #tpu.memory_space<any>> -> memref<1x128xf32, #tpu.memory_space<any>>
    %c6_i32_25 = arith.constant 6 : i32
    %c0_i32_26 = arith.constant 0 : i32
    %42 = tpu.memref_slice %arg5[%c6_i32_25, %c0_i32_26] : memref<8x128xf32, #tpu.memory_space<vmem>> -> memref<1x128xf32, #tpu.memory_space<vmem>>
    tpu.enqueue_dma source(%41 : memref<1x128xf32, #tpu.memory_space<any>>) target(%42 : memref<1x128xf32, #tpu.memory_space<vmem>>) target_semaphore(%arg6 : memref<!tpu.dma_semaphore, #tpu.memory_space<semaphore_mem>>)
    %c7_i32 = arith.constant 7 : i32
    %43 = arith.addi %0, %c7_i32 : i32
    %c0_27 = arith.constant 0 : index
    %44 = arith.index_cast %43 : i32 to index
    %45 = memref.load %arg2[%c0_27, %44] : memref<1x32xi32, #tpu.memory_space<smem>>
    %c0_i32_28 = arith.constant 0 : i32
    %46 = tpu.memref_slice %arg3[%arg0, %45, %c0_i32_28] : memref<2x64x128xf32, #tpu.memory_space<any>> -> memref<1x1x128xf32, #tpu.memory_space<any>>
    %47 = tpu.memref_squeeze %46 : memref<1x1x128xf32, #tpu.memory_space<any>> -> memref<1x128xf32, #tpu.memory_space<any>>
    %c7_i32_29 = arith.constant 7 : i32
    %c0_i32_30 = arith.constant 0 : i32
    %48 = tpu.memref_slice %arg5[%c7_i32_29, %c0_i32_30] : memref<8x128xf32, #tpu.memory_space<vmem>> -> memref<1x128xf32, #tpu.memory_space<vmem>>
    tpu.enqueue_dma source(%47 : memref<1x128xf32, #tpu.memory_space<any>>) target(%48 : memref<1x128xf32, #tpu.memory_space<vmem>>) target_semaphore(%arg6 : memref<!tpu.dma_semaphore, #tpu.memory_space<semaphore_mem>>)
    %c0_i32_31 = arith.constant 0 : i32
    %49 = tpu.memref_slice %arg3[%arg0, %3, %c0_i32_31] : memref<2x64x128xf32, #tpu.memory_space<any>> -> memref<1x1x128xf32, #tpu.memory_space<any>>
    %50 = tpu.memref_squeeze %49 : memref<1x1x128xf32, #tpu.memory_space<any>> -> memref<1x128xf32, #tpu.memory_space<any>>
    %c0_i32_32 = arith.constant 0 : i32
    %c0_i32_33 = arith.constant 0 : i32
    %51 = tpu.memref_slice %arg5[%c0_i32_32, %c0_i32_33] : memref<8x128xf32, #tpu.memory_space<vmem>> -> memref<1x128xf32, #tpu.memory_space<vmem>>
    tpu.wait_dma2 semaphore(%arg6 : memref<!tpu.dma_semaphore, #tpu.memory_space<semaphore_mem>>) src(%50 : memref<1x128xf32, #tpu.memory_space<any>>) dst(%51 : memref<1x128xf32, #tpu.memory_space<vmem>>)
    %c0_i32_34 = arith.constant 0 : i32
    %52 = tpu.memref_slice %arg3[%arg0, %9, %c0_i32_34] : memref<2x64x128xf32, #tpu.memory_space<any>> -> memref<1x1x128xf32, #tpu.memory_space<any>>
    %53 = tpu.memref_squeeze %52 : memref<1x1x128xf32, #tpu.memory_space<any>> -> memref<1x128xf32, #tpu.memory_space<any>>
    %c1_i32_35 = arith.constant 1 : i32
    %c0_i32_36 = arith.constant 0 : i32
    %54 = tpu.memref_slice %arg5[%c1_i32_35, %c0_i32_36] : memref<8x128xf32, #tpu.memory_space<vmem>> -> memref<1x128xf32, #tpu.memory_space<vmem>>
    tpu.wait_dma2 semaphore(%arg6 : memref<!tpu.dma_semaphore, #tpu.memory_space<semaphore_mem>>) src(%53 : memref<1x128xf32, #tpu.memory_space<any>>) dst(%54 : memref<1x128xf32, #tpu.memory_space<vmem>>)
    %c0_i32_37 = arith.constant 0 : i32
    %55 = tpu.memref_slice %arg3[%arg0, %15, %c0_i32_37] : memref<2x64x128xf32, #tpu.memory_space<any>> -> memref<1x1x128xf32, #tpu.memory_space<any>>
    %56 = tpu.memref_squeeze %55 : memref<1x1x128xf32, #tpu.memory_space<any>> -> memref<1x128xf32, #tpu.memory_space<any>>
    %c2_i32_38 = arith.constant 2 : i32
    %c0_i32_39 = arith.constant 0 : i32
    %57 = tpu.memref_slice %arg5[%c2_i32_38, %c0_i32_39] : memref<8x128xf32, #tpu.memory_space<vmem>> -> memref<1x128xf32, #tpu.memory_space<vmem>>
    tpu.wait_dma2 semaphore(%arg6 : memref<!tpu.dma_semaphore, #tpu.memory_space<semaphore_mem>>) src(%56 : memref<1x128xf32, #tpu.memory_space<any>>) dst(%57 : memref<1x128xf32, #tpu.memory_space<vmem>>)
    %c0_i32_40 = arith.constant 0 : i32
    %58 = tpu.memref_slice %arg3[%arg0, %21, %c0_i32_40] : memref<2x64x128xf32, #tpu.memory_space<any>> -> memref<1x1x128xf32, #tpu.memory_space<any>>
    %59 = tpu.memref_squeeze %58 : memref<1x1x128xf32, #tpu.memory_space<any>> -> memref<1x128xf32, #tpu.memory_space<any>>
    %c3_i32_41 = arith.constant 3 : i32
    %c0_i32_42 = arith.constant 0 : i32
    %60 = tpu.memref_slice %arg5[%c3_i32_41, %c0_i32_42] : memref<8x128xf32, #tpu.memory_space<vmem>> -> memref<1x128xf32, #tpu.memory_space<vmem>>
    tpu.wait_dma2 semaphore(%arg6 : memref<!tpu.dma_semaphore, #tpu.memory_space<semaphore_mem>>) src(%59 : memref<1x128xf32, #tpu.memory_space<any>>) dst(%60 : memref<1x128xf32, #tpu.memory_space<vmem>>)
    %c0_i32_43 = arith.constant 0 : i32
    %61 = tpu.memref_slice %arg3[%arg0, %27, %c0_i32_43] : memref<2x64x128xf32, #tpu.memory_space<any>> -> memref<1x1x128xf32, #tpu.memory_space<any>>
    %62 = tpu.memref_squeeze %61 : memref<1x1x128xf32, #tpu.memory_space<any>> -> memref<1x128xf32, #tpu.memory_space<any>>
    %c4_i32_44 = arith.constant 4 : i32
    %c0_i32_45 = arith.constant 0 : i32
    %63 = tpu.memref_slice %arg5[%c4_i32_44, %c0_i32_45] : memref<8x128xf32, #tpu.memory_space<vmem>> -> memref<1x128xf32, #tpu.memory_space<vmem>>
    tpu.wait_dma2 semaphore(%arg6 : memref<!tpu.dma_semaphore, #tpu.memory_space<semaphore_mem>>) src(%62 : memref<1x128xf32, #tpu.memory_space<any>>) dst(%63 : memref<1x128xf32, #tpu.memory_space<vmem>>)
    %c0_i32_46 = arith.constant 0 : i32
    %64 = tpu.memref_slice %arg3[%arg0, %33, %c0_i32_46] : memref<2x64x128xf32, #tpu.memory_space<any>> -> memref<1x1x128xf32, #tpu.memory_space<any>>
    %65 = tpu.memref_squeeze %64 : memref<1x1x128xf32, #tpu.memory_space<any>> -> memref<1x128xf32, #tpu.memory_space<any>>
    %c5_i32_47 = arith.constant 5 : i32
    %c0_i32_48 = arith.constant 0 : i32
    %66 = tpu.memref_slice %arg5[%c5_i32_47, %c0_i32_48] : memref<8x128xf32, #tpu.memory_space<vmem>> -> memref<1x128xf32, #tpu.memory_space<vmem>>
    tpu.wait_dma2 semaphore(%arg6 : memref<!tpu.dma_semaphore, #tpu.memory_space<semaphore_mem>>) src(%65 : memref<1x128xf32, #tpu.memory_space<any>>) dst(%66 : memref<1x128xf32, #tpu.memory_space<vmem>>)
    %c0_i32_49 = arith.constant 0 : i32
    %67 = tpu.memref_slice %arg3[%arg0, %39, %c0_i32_49] : memref<2x64x128xf32, #tpu.memory_space<any>> -> memref<1x1x128xf32, #tpu.memory_space<any>>
    %68 = tpu.memref_squeeze %67 : memref<1x1x128xf32, #tpu.memory_space<any>> -> memref<1x128xf32, #tpu.memory_space<any>>
    %c6_i32_50 = arith.constant 6 : i32
    %c0_i32_51 = arith.constant 0 : i32
    %69 = tpu.memref_slice %arg5[%c6_i32_50, %c0_i32_51] : memref<8x128xf32, #tpu.memory_space<vmem>> -> memref<1x128xf32, #tpu.memory_space<vmem>>
    tpu.wait_dma2 semaphore(%arg6 : memref<!tpu.dma_semaphore, #tpu.memory_space<semaphore_mem>>) src(%68 : memref<1x128xf32, #tpu.memory_space<any>>) dst(%69 : memref<1x128xf32, #tpu.memory_space<vmem>>)
    %c0_i32_52 = arith.constant 0 : i32
    %70 = tpu.memref_slice %arg3[%arg0, %45, %c0_i32_52] : memref<2x64x128xf32, #tpu.memory_space<any>> -> memref<1x1x128xf32, #tpu.memory_space<any>>
    %71 = tpu.memref_squeeze %70 : memref<1x1x128xf32, #tpu.memory_space<any>> -> memref<1x128xf32, #tpu.memory_space<any>>
    %c7_i32_53 = arith.constant 7 : i32
    %c0_i32_54 = arith.constant 0 : i32
    %72 = tpu.memref_slice %arg5[%c7_i32_53, %c0_i32_54] : memref<8x128xf32, #tpu.memory_space<vmem>> -> memref<1x128xf32, #tpu.memory_space<vmem>>
    tpu.wait_dma2 semaphore(%arg6 : memref<!tpu.dma_semaphore, #tpu.memory_space<semaphore_mem>>) src(%71 : memref<1x128xf32, #tpu.memory_space<any>>) dst(%72 : memref<1x128xf32, #tpu.memory_space<vmem>>)
    %c0_55 = arith.constant 0 : index
    %c0_56 = arith.constant 0 : index
    %73 = vector.load %arg5[%c0_55, %c0_56] : memref<8x128xf32, #tpu.memory_space<vmem>>, vector<8x128xf32>
    %c0_57 = arith.constant 0 : index
    %c0_58 = arith.constant 0 : index
    %c0_59 = arith.constant 0 : index
    %74 = vector.load %arg4[%c0_57, %c0_58, %c0_59] : memref<1x8x128xf32, #tpu.memory_space<vmem>>, vector<1x8x128xf32>
    %75 = vector.shape_cast %74 : vector<1x8x128xf32> to vector<8x128xf32>
    %76 = vector.shape_cast %73 : vector<8x128xf32> to vector<1x8x128xf32>
    tpu.vector_store %arg4[%c0_57, %c0_58, %c0_59], %76 {strides = array<i32>} : memref<1x8x128xf32, #tpu.memory_space<vmem>>, vector<1x8x128xf32>,
    return
  }
  func.func @transform_1(%arg0: i32, %arg1: i32, %arg2: memref<1x32xi32, #tpu.memory_space<smem>>) -> (i32, i32, i32) {
    %c0_i32 = arith.constant 0 : i32
    %c0_i32_0 = arith.constant 0 : i32
    return %arg0, %arg1, %c0_i32 : i32, i32, i32
  }
}

</mosaic_0001>

<llo_original>
// kernel: tpu_custom_call.1
$region0: #{tpu_custom_call.1}
  #allocation0 [shape = 'u32[]', space=smem, size = 0x4, offset = 0x4, fixed_abs, tag = 'smem constant byte address 0x4 - core index']
  #allocation1 [shape = 'u32[72,128]{1,0:T(1,128)}', space=vmem, size = 0x9000, scoped, tag = 'internal scratch']
  #allocation2 [shape = 'f32[8,128]{1,0:T(8,128)}', space=vmem, size = 0x1000, scoped, tag = 'scratch operand']
  #allocation3 [shape = 's32[1]{0}', space=sflag, size = 0x4, scoped, tag = 'scratch operand']
  #allocation4 [shape = 's32[1]{0}', space=sflag, size = 0x4, scoped, tag = 'scoped memory for tpu_custom_call.1']
  #allocation5 [shape = 'u8[512]{0}', space=smem, size = 0x200, scoped, tag = 'prefetched SMEM operand 0']
  #allocation8 [shape = 's32[]', space=sflag, size = 0x4, offset = 0, fixed_abs, tag = 'sflag constant byte address 0x0 - dummy sync flag']
  #allocation9 [shape = 's32[]', space=sflag, size = 0x4, offset = 0, fixed_abs, tag = 'sflag constant byte address 0x0 - dummy sync flag']
  #allocation10 [shape = 'u32[]', space=smem, size = 0x4, offset = 0x44, fixed_abs, tag = 'smem constant byte address 0x44 - assertion arg 0']
  #allocation11 [shape = 'u32[]', space=smem, size = 0x4, offset = 0x48, fixed_abs, tag = 'smem constant byte address 0x48 - assertion arg 1']
  #allocation12 [shape = 's32[]', space=sflag, size = 0x4, offset = 0, fixed_abs, tag = 'sflag constant byte address 0x0 - dummy sync flag']
  #allocation13 [shape = 's32[]', space=sflag, size = 0x4, offset = 0, fixed_abs, tag = 'sflag constant byte address 0x0 - dummy sync flag']
  #allocation14 [shape = 's32[]', space=sflag, size = 0x4, offset = 0, fixed_abs, tag = 'sflag constant byte address 0x0 - dummy sync flag']
  #allocation15 [shape = 's32[]', space=sflag, size = 0x4, offset = 0, fixed_abs, tag = 'sflag constant byte address 0x0 - dummy sync flag']
  #allocation16 [shape = 's32[]', space=sflag, size = 0x4, offset = 0, fixed_abs, tag = 'sflag constant byte address 0x0 - dummy sync flag']
  #allocation17 [shape = 's32[]', space=sflag, size = 0x4, offset = 0, fixed_abs, tag = 'sflag constant byte address 0x0 - dummy sync flag']
  #allocation18 [shape = 's32[]', space=sflag, size = 0x4, offset = 0, fixed_abs, tag = 'sflag constant byte address 0x0 - dummy sync flag']
  #allocation19 [shape = 's32[]', space=sflag, size = 0x4, offset = 0, fixed_abs, tag = 'sflag constant byte address 0x0 - dummy sync flag']
  #allocation20 [shape = 's32[]', space=sflag, size = 0x4, offset = 0, fixed_abs, tag = 'sflag constant byte address 0x0 - dummy sync flag']
  #allocation21 [shape = 's32[]', space=sflag, size = 0x4, offset = 0, fixed_abs, tag = 'sflag constant byte address 0x0 - dummy sync flag']
  #allocation22 [shape = 's32[]', space=sflag, size = 0x4, offset = 0, fixed_abs, tag = 'sflag constant byte address 0x0 - dummy sync flag']
  #allocation23 [shape = 's32[]', space=sflag, size = 0x4, offset = 0, fixed_abs, tag = 'sflag constant byte address 0x0 - dummy sync flag']
  #allocation24 [shape = 's32[]', space=sflag, size = 0x4, offset = 0, fixed_abs, tag = 'sflag constant byte address 0x0 - dummy sync flag']
  #allocation25 [shape = 's32[]', space=sflag, size = 0x4, offset = 0, fixed_abs, tag = 'sflag constant byte address 0x0 - dummy sync flag']
  %s0 = inlined_call_operand.hbm [shape: s32[1,32], index: 0, kind: input, shape index: {}]
  %s1 = inlined_call_operand.hbm [shape: f32[2,64,128], index: 1, kind: input, shape index: {}]
  %s2 = inlined_call_operand.hbm [shape: f32[2,32,128], index: 2, kind: output, shape index: {}]
  %s3 = sld [smem:[#allocation0]]
  $region57: #{tpu_custom_call.1} parent=0
    _
  %s5 = ssub.s32 1, %s3
  %s6 = scalar_select 0, %s5, %s3
  %s8 = sshll.u32 %s0, 4
  %s9 = int_to_ptr.hbm [resolvable:$true] %s8
  %11 = dma.hbm_to_smem %s9, 16, [#allocation5], [#allocation4]
  %13 = dma.done [#allocation4], 16
  %14 = sfence
  $region1: #{tpu_custom_call.1} parent=0
    #allocation6 [shape = 'u8[8192]{0}', space=vmem, size = 0x2000, scoped, tag = 'output window, operand 0']
    #allocation7 [shape = 's32[2]{0}', space=sflag, size = 0x8, scoped, tag = 'scoped memory for tpu_custom_call.1']
    %15 = vsyncpa [#allocation7], 0
    %s16 = scalar_lea.sflag [#allocation7], 1
    %17 = vsyncpa %s16, 0
    loop: start=0, step=1, limit=9
    $region2: #{tpu_custom_call.1} parent=1 // loop_pre_header
      _
    $region3: #{tpu_custom_call.1} parent=1 // loop_header
      %s19 = sphi 0, %s23
      %p20 = scmp.ge.s32.totalorder %s19, 9
      %s25 = sphi 0, %s35
      %s26 = sphi 0, %s31
      %s27 = sphi 0, %s25
      %s28 = sphi 0, %s26
      %s40 = sphi 0, %s42
      %s43 = sphi 0, %s40
      %s53 = sphi 0, %s43
    $region4: #{tpu_custom_call.1} parent=1 // loop_header_branch
      %22 = sbr.rel (%p20) target = $region8
    $region5: #{tpu_custom_call.1} parent=1 // loop_body
      %s24 = ssub.s32 %s19, 1
      %s29 = sadd.s32 1, %s26
      %p30 = scmp.ge.s32.totalorder %s29, 4
      %s31 = scalar_select %p30, 0, %s29
      %s32 = sadd.s32 1, %s25
      %s33 = scalar_select %p30, %s32, %s25
      %p34 = scmp.ge.s32.totalorder %s33, 2
      %s35 = scalar_select %p34, 0, %s33
      %s36 = ssub.s32 %s25, %s35
      %s37 = ssub.s32 %s26, %s31
      %s38 = sor.u32 %s36, %s37
      %p39 = scmp.eq.s32.totalorder %s38, 0
      %s41 = sadd.s32 %s40, 1
      %s42 = scalar_select %p39, %s40, %s41
      %p44 = pneg %p39
      %p45 = scmp.eq.s32.totalorder %s19, 7
      %p46 = por %p44, %p45
      %p47 = scmp.ne.s32.totalorder %s40, %s43
      %p48 = scmp.eq.s32.totalorder %s19, 0
      %p49 = por %p47, %p48
      %p50 = scmp.ne.s32.totalorder %s40, %s43
      %p51 = scmp.eq.s32.totalorder %s24, 7
      %p52 = por %p50, %p51
      %p54 = scmp.ne.s32.totalorder %s43, %s53
      %p55 = scmp.eq.s32.totalorder %s24, 0
      %p56 = por %p54, %p55
      %p57 = scmp.lt.s32.totalorder %s19, 8
      // Predicated region
      $region9: #{tpu_custom_call.1} parent=5 // pred_check
        %p58 = pneg %p57
      $region10: #{tpu_custom_call.1} parent=5 // pred_check_branch
        %60 = sbr.rel (%p58) target = $region12
      $region11: #{tpu_custom_call.1} parent=5 // pred_region
        %p61 = pneg %p49
        %p62 = pneg %p46
        %s63 = sand.u32 %s40, 1
        %s64 = scalar_lea.sflag [#allocation7], %s63
        %s65 = sand.u32 %s40, 1
        %s66 = smul.addr %s65, 8
        %s67 = scalar_lea.vmem [#allocation6], %s66
        %s68 = smul.u32 %s26, 8
        %s69 = sld [smem:[#allocation5 + %s68]]
        %s70 = smul.u32 %s25, 64
        %s71 = sadd.s32 %s69, %s70
        %s72 = scalar_lea.hbm %s1, %s71
        // Predicated region
        $region13: #{tpu_custom_call.1} parent=11 // pred_check
          _
        $region14: #{tpu_custom_call.1} parent=11 // pred_check_branch
          %74 = sbr.rel target = $region16
        $region15: #{tpu_custom_call.1} parent=11 // pred_region
          %75 = sst [smem:[#allocation10]] [#allocation9]
          %76 = sst [smem:[#allocation11]] [#allocation8]
        $region16: #{tpu_custom_call.1} parent=11 // pred_fallthru
          _
        %78 = shalt.err (0)
        %s80 = sshll.u32 %s72, 4
        %s81 = int_to_ptr.hbm [resolvable:$true] %s80
        %s82 = sshll.u32 [#allocation2], 4
        %s83 = int_to_ptr.vmem [resolvable:$true] %s82
        %85 = dma.hbm_to_vmem [thread:$0]  %s81, 16, %s83, [#allocation3]
        %s86 = sadd.s32 %s68, 1
        %s87 = sld [smem:[#allocation5 + %s86]]
        %s88 = sadd.s32 %s87, %s70
        %s89 = scalar_lea.hbm %s1, %s88
        %s90 = scalar_lea.vmem [#allocation2], 1
        // Predicated region
        $region17: #{tpu_custom_call.1} parent=11 // pred_check
          _
        $region18: #{tpu_custom_call.1} parent=11 // pred_check_branch
          %92 = sbr.rel target = $region20
        $region19: #{tpu_custom_call.1} parent=11 // pred_region
          %93 = sst [smem:[#allocation10]] [#allocation13]
          %94 = sst [smem:[#allocation11]] [#allocation12]
        $region20: #{tpu_custom_call.1} parent=11 // pred_fallthru
          _
        %96 = shalt.err (0)
        %s98 = sshll.u32 %s89, 4
        %s99 = int_to_ptr.hbm [resolvable:$true] %s98
        %s100 = sshll.u32 %s90, 4
        %s101 = int_to_ptr.vmem [resolvable:$true] %s100
        %103 = dma.hbm_to_vmem [thread:$0]  %s99, 16, %s101, [#allocation3]
        %s104 = sadd.s32 %s68, 2
        %s105 = sld [smem:[#allocation5 + %s104]]
        %s106 = sadd.s32 %s105, %s70
        %s107 = scalar_lea.hbm %s1, %s106
        %s108 = scalar_lea.vmem [#allocation2], 2
        // Predicated region
        $region21: #{tpu_custom_call.1} parent=11 // pred_check
          _
        $region22: #{tpu_custom_call.1} parent=11 // pred_check_branch
          %110 = sbr.rel target = $region24
        $region23: #{tpu_custom_call.1} parent=11 // pred_region
          %111 = sst [smem:[#allocation10]] [#allocation15]
          %112 = sst [smem:[#allocation11]] [#allocation14]
        $region24: #{tpu_custom_call.1} parent=11 // pred_fallthru
          _
        %114 = shalt.err (0)
        %s116 = sshll.u32 %s107, 4
        %s117 = int_to_ptr.hbm [resolvable:$true] %s116
        %s118 = sshll.u32 %s108, 4
        %s119 = int_to_ptr.vmem [resolvable:$true] %s118
        %121 = dma.hbm_to_vmem [thread:$0]  %s117, 16, %s119, [#allocation3]
        %s122 = sadd.s32 %s68, 3
        %s123 = sld [smem:[#allocation5 + %s122]]
        %s124 = sadd.s32 %s123, %s70
        %s125 = scalar_lea.hbm %s1, %s124
        %s126 = scalar_lea.vmem [#allocation2], 3
        // Predicated region
        $region25: #{tpu_custom_call.1} parent=11 // pred_check
          _
        $region26: #{tpu_custom_call.1} parent=11 // pred_check_branch
          %128 = sbr.rel target = $region28
        $region27: #{tpu_custom_call.1} parent=11 // pred_region
          %129 = sst [smem:[#allocation10]] [#allocation17]
          %130 = sst [smem:[#allocation11]] [#allocation16]
        $region28: #{tpu_custom_call.1} parent=11 // pred_fallthru
          _
        %132 = shalt.err (0)
        %s134 = sshll.u32 %s125, 4
        %s135 = int_to_ptr.hbm [resolvable:$true] %s134
        %s136 = sshll.u32 %s126, 4
        %s137 = int_to_ptr.vmem [resolvable:$true] %s136
        %139 = dma.hbm_to_vmem [thread:$0]  %s135, 16, %s137, [#allocation3]
        %s140 = sadd.s32 %s68, 4
        %s141 = sld [smem:[#allocation5 + %s140]]
        %s142 = sadd.s32 %s141, %s70
        %s143 = scalar_lea.hbm %s1, %s142
        %s144 = scalar_lea.vmem [#allocation2], 4
        // Predicated region
        $region29: #{tpu_custom_call.1} parent=11 // pred_check
          _
        $region30: #{tpu_custom_call.1} parent=11 // pred_check_branch
          %146 = sbr.rel target = $region32
        $region31: #{tpu_custom_call.1} parent=11 // pred_region
          %147 = sst [smem:[#allocation10]] [#allocation19]
          %148 = sst [smem:[#allocation11]] [#allocation18]
        $region32: #{tpu_custom_call.1} parent=11 // pred_fallthru
          _
        %150 = shalt.err (0)
        %s152 = sshll.u32 %s143, 4
        %s153 = int_to_ptr.hbm [resolvable:$true] %s152
        %s154 = sshll.u32 %s144, 4
        %s155 = int_to_ptr.vmem [resolvable:$true] %s154
        %157 = dma.hbm_to_vmem [thread:$0]  %s153, 16, %s155, [#allocation3]
        %s158 = sadd.s32 %s68, 5
        %s159 = sld [smem:[#allocation5 + %s158]]
        %s160 = sadd.s32 %s159, %s70
        %s161 = scalar_lea.hbm %s1, %s160
        %s162 = scalar_lea.vmem [#allocation2], 5
        // Predicated region
        $region33: #{tpu_custom_call.1} parent=11 // pred_check
          _
        $region34: #{tpu_custom_call.1} parent=11 // pred_check_branch
          %164 = sbr.rel target = $region36
        $region35: #{tpu_custom_call.1} parent=11 // pred_region
          %165 = sst [smem:[#allocation10]] [#allocation21]
          %166 = sst [smem:[#allocation11]] [#allocation20]
        $region36: #{tpu_custom_call.1} parent=11 // pred_fallthru
          _
        %168 = shalt.err (0)
        %s170 = sshll.u32 %s161, 4
        %s171 = int_to_ptr.hbm [resolvable:$true] %s170
        %s172 = sshll.u32 %s162, 4
        %s173 = int_to_ptr.vmem [resolvable:$true] %s172
        %175 = dma.hbm_to_vmem [thread:$0]  %s171, 16, %s173, [#allocation3]
        %s176 = sadd.s32 %s68, 6
        %s177 = sld [smem:[#allocation5 + %s176]]
        %s178 = sadd.s32 %s177, %s70
        %s179 = scalar_lea.hbm %s1, %s178
        %s180 = scalar_lea.vmem [#allocation2], 6
        // Predicated region
        $region37: #{tpu_custom_call.1} parent=11 // pred_check
          _
        $region38: #{tpu_custom_call.1} parent=11 // pred_check_branch
          %182 = sbr.rel target = $region40
        $region39: #{tpu_custom_call.1} parent=11 // pred_region
          %183 = sst [smem:[#allocation10]] [#allocation23]
          %184 = sst [smem:[#allocation11]] [#allocation22]
        $region40: #{tpu_custom_call.1} parent=11 // pred_fallthru
          _
        %186 = shalt.err (0)
        %s188 = sshll.u32 %s179, 4
        %s189 = int_to_ptr.hbm [resolvable:$true] %s188
        %s190 = sshll.u32 %s180, 4
        %s191 = int_to_ptr.vmem [resolvable:$true] %s190
        %193 = dma.hbm_to_vmem [thread:$0]  %s189, 16, %s191, [#allocation3]
        %s194 = sadd.s32 %s68, 7
        %s195 = sld [smem:[#allocation5 + %s194]]
        %s196 = sadd.s32 %s195, %s70
        %s197 = scalar_lea.hbm %s1, %s196
        %s198 = scalar_lea.vmem [#allocation2], 7
        // Predicated region
        $region41: #{tpu_custom_call.1} parent=11 // pred_check
          _
        $region42: #{tpu_custom_call.1} parent=11 // pred_check_branch
          %200 = sbr.rel target = $region44
        $region43: #{tpu_custom_call.1} parent=11 // pred_region
          %201 = sst [smem:[#allocation10]] [#allocation25]
          %202 = sst [smem:[#allocation11]] [#allocation24]
        $region44: #{tpu_custom_call.1} parent=11 // pred_fallthru
          _
        %204 = shalt.err (0)
        %s206 = sshll.u32 %s197, 4
        %s207 = int_to_ptr.hbm [resolvable:$true] %s206
        %s208 = sshll.u32 %s198, 4
        %s209 = int_to_ptr.vmem [resolvable:$true] %s208
        %211 = dma.hbm_to_vmem [thread:$0]  %s207, 16, %s209, [#allocation3]
        %s212 = smul.u32 1, 1
        %s213 = sshll.u32 %s212, 4
        %214 = dma.done [#allocation3], %s213
        %s215 = sshll.u32 %s212, 4
        %216 = dma.done [#allocation3], %s215
        %s217 = sshll.u32 %s212, 4
        %218 = dma.done [#allocation3], %s217
        %s219 = sshll.u32 %s212, 4
        %220 = dma.done [#allocation3], %s219
        %s221 = sshll.u32 %s212, 4
        %222 = dma.done [#allocation3], %s221
        %s223 = sshll.u32 %s212, 4
        %224 = dma.done [#allocation3], %s223
        %s225 = sshll.u32 %s212, 4
        %226 = dma.done [#allocation3], %s225
        %s227 = sshll.u32 %s212, 4
        %228 = dma.done [#allocation3], %s227
        %v229 = vld [vmem:[#allocation2] sm:$0xff]
        %230 = vst [vmem:[%s67] sm:$0xff] %v229
        %s231 = sand.u32 %s40, 1
        %s232 = scalar_lea.sflag [#allocation7], %s231
        %s233 = sand.u32 %s40, 1
        %s234 = smul.addr %s233, 8
        %s235 = scalar_lea.vmem [#allocation6], %s234
        // Predicated region
        $region45: #{tpu_custom_call.1} parent=11 // pred_check
          %p236 = pneg %p46
        $region46: #{tpu_custom_call.1} parent=11 // pred_check_branch
          %238 = sbr.rel (%p236) target = $region48
        $region47: #{tpu_custom_call.1} parent=11 // pred_region
          %240 = vsyncadd %s232, 0
          %s241 = smul.addr %s25, 4
          %s242 = sadd.s32 %s26, %s241
          %s243 = smul.addr %s242, 8
          %s244 = scalar_lea.hbm %s2, %s243
          %s246 = sshll.u32 %s235, 4
          %s247 = int_to_ptr.vmem [resolvable:$true] %s246
          %s248 = sshll.u32 %s244, 4
          %s249 = int_to_ptr.hbm [resolvable:$true] %s248
          %251 = dma.vmem_to_hbm [thread:$0]  %s247, 128, %s249, %s232
        $region48: #{tpu_custom_call.1} parent=11 // pred_fallthru
          _
      $region12: #{tpu_custom_call.1} parent=5 // pred_fallthru
        _
      %p252 = scmp.le.s32.totalorder 1, %s19
      // Predicated region
      $region49: #{tpu_custom_call.1} parent=5 // pred_check
        %p253 = pneg %p252
      $region50: #{tpu_custom_call.1} parent=5 // pred_check_branch
        %255 = sbr.rel (%p253) target = $region52
      $region51: #{tpu_custom_call.1} parent=5 // pred_region
        %s256 = ssub.s32 %s19, 1
        // Predicated region
        $region53: #{tpu_custom_call.1} parent=51 // pred_check
          %p257 = pneg %p52
        $region54: #{tpu_custom_call.1} parent=51 // pred_check_branch
          %259 = sbr.rel (%p257) target = $region56
        $region55: #{tpu_custom_call.1} parent=51 // pred_region
          %s260 = sand.u32 %s43, 1
          %s261 = scalar_lea.sflag [#allocation7], %s260
          %s262 = sand.u32 %s43, 1
          %s263 = smul.addr %s262, 8
          %s264 = scalar_lea.vmem [#allocation6], %s263
          %266 = dma.done %s261, 128
        $region56: #{tpu_custom_call.1} parent=51 // pred_fallthru
          _
      $region52: #{tpu_custom_call.1} parent=5 // pred_fallthru
        _
    $region6: #{tpu_custom_call.1} parent=1 // loop_footer
      %s23 = sadd.s32 1, %s19
    $region7: #{tpu_custom_call.1} parent=1 // loop_footer_branch
      %18 = sbr.rel target = $region3
    $region8: #{tpu_custom_call.1} parent=1 // loop_exit
      _
    %267 = vsyncpa [#allocation7], 1
    %s268 = scalar_lea.sflag [#allocation7], 1
    %269 = vsyncpa %s268, 1
  %270 = vsyncmov [#allocation3]
  %s271 = vpop.sfrf %270
  %p272 = scmp.eq.s32.totalorder %s271, 0
  %p273 = pneg %p272
  %275 = shalt.err (%p273)

</llo_original>
